<compile_context>
chip_gen: v7x
topology: tpu7x:2x2x1
jax: 0.10.0
libtpu: 0.0.40
codegen_flags: <defaults>
</compile_context>

<pallas_src>
import jax
import jax.numpy as jnp
from jax.experimental import pallas as pl
from jax.experimental.pallas import tpu as pltpu


def _round_up(n, m):
    return ((n + m - 1) // m) * m


def _pad2d(a, rows, cols, dtype):
    a = a.astype(dtype)
    if a.shape == (rows, cols):
        return a
    return jnp.zeros((rows, cols), dtype).at[: a.shape[0], : a.shape[1]].set(a)


# ----------------------------------------------------------------------------
# One-time parameter packing (hoisted out of the per-step forward).
# ----------------------------------------------------------------------------
def prepare_params(params, *, compute_dtype=jnp.bfloat16):
    """Pack LiquidNeuron parameters into padded, pre-transposed TPU operands.

    Call once before a recurrent rollout; `liquid_neuron_forward` reuses the
    packed operands every timestep (no per-step transpose / pad / concat HBM
    traffic).
    """
    w_in = params["w_in"]     # (H, d_in), nn.Linear layout
    w_rec = params["w_rec"]   # (H, H)
    H, d_in = w_in.shape

    kx = _round_up(d_in, 128)   # lane-padded K for the input matmul
    kh = _round_up(H, 128)      # lane-padded K for the recurrent matmul
    hp = _round_up(H, 128)      # lane-padded N (hidden)

    w_in_t = _pad2d(w_in.T, kx, hp, compute_dtype)      # (kx, hp)
    w_rec_t = _pad2d(w_rec.T, kh, hp, compute_dtype)    # (kh, hp)

    # bias / tau / (1 - tau) merged into one sublane-aligned f32 slab.
    pslab = jnp.zeros((8, hp), jnp.float32)
    pslab = pslab.at[0, :H].set((params["b_in"] + params["b_rec"]).astype(jnp.float32))
    pslab = pslab.at[1, :H].set(params["tau"].astype(jnp.float32))
    pslab = pslab.at[2, :H].set(1.0 - params["tau"].astype(jnp.float32))

    return {
        "w_in_t": w_in_t,
        "w_rec_t": w_rec_t,
        "pslab": pslab,
        "d_in": d_in,
        "hidden": H,
        "compute_dtype": compute_dtype,
    }


# ----------------------------------------------------------------------------
# Kernel: one batch tile.
# ----------------------------------------------------------------------------
def _liquid_neuron_kernel(x_ref, h_ref, w_in_ref, w_rec_ref, p_ref, out_ref):
    """x_ref    : (TILE_B, Kx)  compute dtype, lane-padded input
       h_ref    : (TILE_B, Kh)  float32 recurrent state (full-precision decay)
       w_in_ref : (Kx, Hp)      compute dtype, pre-transposed W_in (resident)
       w_rec_ref: (Kh, Hp)      compute dtype, pre-transposed W_rec (resident)
       p_ref    : (8, Hp)       f32: row0 = b_in+b_rec, row1 = tau, row2 = 1-tau
       out_ref  : (TILE_B, Hp)  float32 new state
    """
    h32 = h_ref[...]
    # Two MXU matmuls against VMEM-resident weights, f32 accumulation.
    pre = jnp.dot(x_ref[...], w_in_ref[...], preferred_element_type=jnp.float32)
    pre = pre + jnp.dot(h32.astype(w_rec_ref.dtype), w_rec_ref[...],
                        preferred_element_type=jnp.float32)
    p = p_ref[...]
    bias, tau, omt = p[0:1, :], p[1:2, :], p[2:3, :]
    # tanh runs on the EUP slot; decay uses the full-precision f32 h_prev.
    out_ref[...] = (omt * h32 + tau * jnp.tanh(pre + bias)).astype(out_ref.dtype)


# ----------------------------------------------------------------------------
# Per-step forward (reuses the packed params).
# ----------------------------------------------------------------------------
def liquid_neuron_forward(x, h_prev, prepared, *, tile_b=256,
                          split_batch_for_megacore=True,
                          single_buffer_weights=True):
    """x: (B, input_size), h_prev: (B, hidden). Returns new state (B, hidden) f32."""
    B, d_in = x.shape
    H = prepared["hidden"]
    assert d_in == prepared["d_in"] and h_prev.shape == (B, H)
    cdt = prepared["compute_dtype"]

    w_in_t, w_rec_t, pslab = prepared["w_in_t"], prepared["w_rec_t"], prepared["pslab"]
    kx, hp = w_in_t.shape
    kh = w_rec_t.shape[0]

    # Batch tiling: sublane-align, clamp to the batch, and split into >= 2 grid
    # steps when possible so both v7x TensorCores get work.
    b8 = _round_up(B, 8)
    tile_b = max(8, min(_round_up(tile_b, 8), b8))
    if split_batch_for_megacore and b8 >= 16 and b8 <= tile_b:
        tile_b = _round_up(pl.cdiv(b8, 2), 8)
    b_pad = _round_up(b8, tile_b)
    grid = (b_pad // tile_b,)

    # Per-step padding of activations only (weights packed once elsewhere).
    x_p = _pad2d(x, b_pad, kx, cdt)
    h_p = _pad2d(h_prev, b_pad, kh, jnp.float32)

    # Scoped-VMEM budget: resident weights (+ param slab) + double-buffered
    # activation / output tiles, with 2x headroom.
    wbuf = 1 if single_buffer_weights else 2
    cbytes = jnp.dtype(cdt).itemsize
    resident = ((kx + kh) * hp * cbytes + 8 * hp * 4) * wbuf
    streamed = tile_b * (kx * cbytes + kh * 4 + hp * 4) * 2
    vmem_limit = int(min(64 * 2 ** 20, max(2 * (resident + streamed), 16 * 2 ** 20)))

    def run(weight_pipeline_mode):
        resident_kwargs = ({} if weight_pipeline_mode is None
                           else {"pipeline_mode": weight_pipeline_mode})
        return pl.pallas_call(
            _liquid_neuron_kernel,
            out_shape=jax.ShapeDtypeStruct((b_pad, hp), jnp.float32),
            grid_spec=pltpu.PrefetchScalarGridSpec(
                num_scalar_prefetch=0,
                grid=grid,
                in_specs=[
                    pl.BlockSpec((tile_b, kx), lambda i: (i, 0)),   # x tile
                    pl.BlockSpec((tile_b, kh), lambda i: (i, 0)),   # h_prev tile (f32)
                    pl.BlockSpec((kx, hp), lambda i: (0, 0), **resident_kwargs),  # W_in.T
                    pl.BlockSpec((kh, hp), lambda i: (0, 0), **resident_kwargs),  # W_rec.T
                    pl.BlockSpec((8, hp), lambda i: (0, 0), **resident_kwargs),   # bias/tau slab
                ],
                out_specs=pl.BlockSpec((tile_b, hp), lambda i: (i, 0)),
            ),
            compiler_params=pltpu.CompilerParams(
                dimension_semantics=("parallel",),
                vmem_limit_bytes=vmem_limit),
        )(x_p, h_p, w_in_t, w_rec_t, pslab)

    if single_buffer_weights:
        try:
            out = run(pl.Buffered(1))
        except Exception:  # pragma: no cover
            # Fallback if this JAX build rejects single-buffered pipeline_mode.
            out = run(None)
    else:
        out = run(None)

    return out[:B, :H]


# ----------------------------------------------------------------------------
# Init / reference (match the PyTorch module).
# ----------------------------------------------------------------------------
def init_params(key, input_size, hidden_size):
    """PyTorch-Linear-style uniform init; tau initialized to ones (as in module)."""
    ks = jax.random.split(key, 4)

    def lin(kw, kb, fan_out, fan_in):
        bound = 1.0 / jnp.sqrt(fan_in)
        w = jax.random.uniform(kw, (fan_out, fan_in), jnp.float32, -bound, bound)
        b = jax.random.uniform(kb, (fan_out,), jnp.float32, -bound, bound)
        return w, b

    w_in, b_in = lin(ks[0], ks[1], hidden_size, input_size)
    w_rec, b_rec = lin(ks[2], ks[3], hidden_size, hidden_size)
    tau = jnp.ones((hidden_size,), jnp.float32)
    return {"w_in": w_in, "b_in": b_in,
            "w_rec": w_rec, "b_rec": b_rec,
            "tau": tau}


def reference_forward(x, h_prev, params):
    """Pure-JAX reference matching the PyTorch LiquidNeuron.forward exactly."""
    pre = (x @ params["w_in"].T + params["b_in"]
           + h_prev @ params["w_rec"].T + params["b_rec"])
    return (1.0 - params["tau"]) * h_prev + params["tau"] * jnp.tanh(pre)


if __name__ == "__main__":
    key = jax.random.PRNGKey(0)
    k_x, k_h, k_p, k_t = jax.random.split(key, 4)

    batch, input_size, hidden_size = 2, 64, 32
    x = jax.random.normal(k_x, (batch, input_size), jnp.float32)
    h0 = jax.random.normal(k_h, (batch, hidden_size), jnp.float32)

    params = init_params(k_p, input_size, hidden_size)
    # Non-trivial tau so both the (1 - tau) * h_prev and tau * tanh(...) terms
    # are exercised (module init is all-ones, which zeroes the decay term).
    params["tau"] = jax.random.uniform(k_t, (hidden_size,), jnp.float32, 0.1, 0.9)

    ref = reference_forward(x, h0, params)

    # --- f32 matmul inputs: tight check against the pure-JAX reference. ------
    prep_f32 = prepare_params(params, compute_dtype=jnp.float32)
    out_f32 = jax.block_until_ready(liquid_neuron_forward(x, h0, prep_f32))
    assert out_f32.shape == (batch, hidden_size)
    assert jnp.allclose(out_f32, ref, atol=5e-3, rtol=5e-3), "f32 mismatch vs reference"

    # --- default bf16 matmul inputs (f32 accumulation / epilogue). -----------
    prep_bf16 = prepare_params(params)   # compute_dtype=bfloat16
    out_bf16 = jax.block_until_ready(liquid_neuron_forward(x, h0, prep_bf16))
    assert jnp.allclose(out_bf16, ref, atol=3e-2, rtol=3e-2), "bf16 mismatch vs reference"

    # --- small recurrent rollout: params packed ONCE, kernel reused per step. -
    steps = 4
    xs = jax.random.normal(jax.random.PRNGKey(1), (steps, batch, input_size), jnp.float32)
    h_k, h_r = h0, h0
    for t in range(steps):
        h_k = liquid_neuron_forward(xs[t], h_k, prep_f32)
        h_r = reference_forward(xs[t], h_r, params)
    h_k = jax.block_until_ready(h_k)
    assert jnp.allclose(h_k, h_r, atol=1e-2, rtol=1e-2), "rollout mismatch vs reference"

    print("KERNEL_OK")
</pallas_src>

<mosaic_0001>
module attributes {stable_mosaic.version = 11 : i64} {
  func.func @_liquid_neuron_kernel(%arg0: i32, %arg1: memref<8x128xf32, #tpu.memory_space<vmem>>, %arg2: memref<8x128xf32, #tpu.memory_space<vmem>>, %arg3: memref<128x128xf32, #tpu.memory_space<vmem>>, %arg4: memref<128x128xf32, #tpu.memory_space<vmem>>, %arg5: memref<8x128xf32, #tpu.memory_space<vmem>>, %arg6: memref<8x128xf32, #tpu.memory_space<vmem>>) attributes {dimension_semantics = [#tpu.dimension_semantics<parallel>], iteration_bounds = array<i64: 1>, scalar_prefetch = 0 : i64, scratch_operands = 0 : i64, tpu.core_type = #tpu.core_type<tc>, window_params = [{transform_indices = @transform_0, window_bounds = array<i64: 8, 128>}, {transform_indices = @transform_1, window_bounds = array<i64: 8, 128>}, {pipeline_mode = #tpu.pipeline_mode<synchronous>, transform_indices = @transform_2, window_bounds = array<i64: 128, 128>}, {pipeline_mode = #tpu.pipeline_mode<synchronous>, transform_indices = @transform_3, window_bounds = array<i64: 128, 128>}, {pipeline_mode = #tpu.pipeline_mode<synchronous>, transform_indices = @transform_4, window_bounds = array<i64: 8, 128>}, {transform_indices = @transform_5, window_bounds = array<i64: 8, 128>}]} {
    %c0 = arith.constant 0 : index
    %c0_0 = arith.constant 0 : index
    %0 = vector.load %arg2[%c0, %c0_0] : memref<8x128xf32, #tpu.memory_space<vmem>>, vector<8x128xf32>
    %c0_1 = arith.constant 0 : index
    %c0_2 = arith.constant 0 : index
    %1 = vector.load %arg1[%c0_1, %c0_2] : memref<8x128xf32, #tpu.memory_space<vmem>>, vector<8x128xf32>
    %c0_3 = arith.constant 0 : index
    %c0_4 = arith.constant 0 : index
    %2 = vector.load %arg3[%c0_3, %c0_4] : memref<128x128xf32, #tpu.memory_space<vmem>>, vector<128x128xf32>
    %cst = arith.constant dense<0.000000e+00> : vector<8x128xf32>
    %3 = tpu.matmul %1, %2, %cst {dimension_numbers = #tpu.dot_dimension_numbers<[1], [0], [0], [1], [0, 0, 1, 1], [], []>} : vector<8x128xf32>, vector<128x128xf32>, vector<8x128xf32> -> vector<8x128xf32>
    %c0_5 = arith.constant 0 : index
    %c0_6 = arith.constant 0 : index
    %4 = vector.load %arg4[%c0_5, %c0_6] : memref<128x128xf32, #tpu.memory_space<vmem>>, vector<128x128xf32>
    %cst_7 = arith.constant dense<0.000000e+00> : vector<8x128xf32>
    %5 = tpu.matmul %0, %4, %cst_7 {dimension_numbers = #tpu.dot_dimension_numbers<[1], [0], [0], [1], [0, 0, 1, 1], [], []>} : vector<8x128xf32>, vector<128x128xf32>, vector<8x128xf32> -> vector<8x128xf32>
    %6 = arith.addf %3, %5 : vector<8x128xf32>
    %c0_8 = arith.constant 0 : index
    %c0_9 = arith.constant 0 : index
    %7 = vector.load %arg5[%c0_8, %c0_9] : memref<8x128xf32, #tpu.memory_space<vmem>>, vector<8x128xf32>
    %8 = vector.extract_strided_slice %7 {offsets = [0, 0], sizes = [1, 128], strides = [1, 1]} : vector<8x128xf32> to vector<1x128xf32>
    %9 = vector.extract_strided_slice %7 {offsets = [1, 0], sizes = [1, 128], strides = [1, 1]} : vector<8x128xf32> to vector<1x128xf32>
    %10 = vector.extract_strided_slice %7 {offsets = [2, 0], sizes = [1, 128], strides = [1, 1]} : vector<8x128xf32> to vector<1x128xf32>
    %11 = vector.broadcast %10 : vector<1x128xf32> to vector<8x128xf32>
    %12 = arith.mulf %11, %0 : vector<8x128xf32>
    %13 = vector.broadcast %8 : vector<1x128xf32> to vector<8x128xf32>
    %14 = arith.addf %6, %13 : vector<8x128xf32>
    %15 = math.tanh %14 : vector<8x128xf32>
    %16 = vector.broadcast %9 : vector<1x128xf32> to vector<8x128xf32>
    %17 = arith.mulf %16, %15 : vector<8x128xf32>
    %18 = arith.addf %12, %17 : vector<8x128xf32>
    %c0_10 = arith.constant 0 : index
    %c0_11 = arith.constant 0 : index
    %19 = vector.load %arg6[%c0_10, %c0_11] : memref<8x128xf32, #tpu.memory_space<vmem>>, vector<8x128xf32>
    tpu.vector_store %arg6[%c0_10, %c0_11], %18 {strides = array<i32>} : memref<8x128xf32, #tpu.memory_space<vmem>>, vector<8x128xf32>,
    return
  }
  func.func @transform_0(%arg0: i32) -> (i32, i32) {
    %c0_i32 = arith.constant 0 : i32
    %c0_i32_0 = arith.constant 0 : i32
    return %arg0, %c0_i32 : i32, i32
  }
  func.func @transform_1(%arg0: i32) -> (i32, i32) {
    %c0_i32 = arith.constant 0 : i32
    %c0_i32_0 = arith.constant 0 : i32
    return %arg0, %c0_i32 : i32, i32
  }
  func.func @transform_2(%arg0: i32) -> (i32, i32) {
    %c0_i32 = arith.constant 0 : i32
    %c0_i32_0 = arith.constant 0 : i32
    %c0_i32_1 = arith.constant 0 : i32
    return %c0_i32, %c0_i32_0 : i32, i32
  }
  func.func @transform_3(%arg0: i32) -> (i32, i32) {
    %c0_i32 = arith.constant 0 : i32
    %c0_i32_0 = arith.constant 0 : i32
    %c0_i32_1 = arith.constant 0 : i32
    return %c0_i32, %c0_i32_0 : i32, i32
  }
  func.func @transform_4(%arg0: i32) -> (i32, i32) {
    %c0_i32 = arith.constant 0 : i32
    %c0_i32_0 = arith.constant 0 : i32
    %c0_i32_1 = arith.constant 0 : i32
    return %c0_i32, %c0_i32_0 : i32, i32
  }
  func.func @transform_5(%arg0: i32) -> (i32, i32) {
    %c0_i32 = arith.constant 0 : i32
    %c0_i32_0 = arith.constant 0 : i32
    return %arg0, %c0_i32 : i32, i32
  }
}

module attributes {stable_mosaic.version = 11 : i64} {
  func.func @_liquid_neuron_kernel(%arg0: i32, %arg1: memref<8x128xf32, #tpu.memory_space<vmem>>, %arg2: memref<8x128xf32, #tpu.memory_space<vmem>>, %arg3: memref<128x128xf32, #tpu.memory_space<vmem>>, %arg4: memref<128x128xf32, #tpu.memory_space<vmem>>, %arg5: memref<8x128xf32, #tpu.memory_space<vmem>>, %arg6: memref<8x128xf32, #tpu.memory_space<vmem>>) attributes {dimension_semantics = [#tpu.dimension_semantics<parallel>], iteration_bounds = array<i64: 1>, scalar_prefetch = 0 : i64, scratch_operands = 0 : i64, tpu.core_type = #tpu.core_type<tc>, window_params = [{transform_indices = @transform_0, window_bounds = array<i64: 8, 128>}, {transform_indices = @transform_1, window_bounds = array<i64: 8, 128>}, {pipeline_mode = #tpu.pipeline_mode<synchronous>, transform_indices = @transform_2, window_bounds = array<i64: 128, 128>}, {pipeline_mode = #tpu.pipeline_mode<synchronous>, transform_indices = @transform_3, window_bounds = array<i64: 128, 128>}, {pipeline_mode = #tpu.pipeline_mode<synchronous>, transform_indices = @transform_4, window_bounds = array<i64: 8, 128>}, {transform_indices = @transform_5, window_bounds = array<i64: 8, 128>}]} {
    %c0 = arith.constant 0 : index
    %c0_0 = arith.constant 0 : index
    %0 = vector.load %arg2[%c0, %c0_0] : memref<8x128xf32, #tpu.memory_space<vmem>>, vector<8x128xf32>
    %c0_1 = arith.constant 0 : index
    %c0_2 = arith.constant 0 : index
    %1 = vector.load %arg1[%c0_1, %c0_2] : memref<8x128xf32, #tpu.memory_space<vmem>>, vector<8x128xf32>
    %c0_3 = arith.constant 0 : index
    %c0_4 = arith.constant 0 : index
    %2 = vector.load %arg3[%c0_3, %c0_4] : memref<128x128xf32, #tpu.memory_space<vmem>>, vector<128x128xf32>
    %cst = arith.constant dense<0.000000e+00> : vector<8x128xf32>
    %3 = tpu.matmul %1, %2, %cst {dimension_numbers = #tpu.dot_dimension_numbers<[1], [0], [0], [1], [0, 0, 1, 1], [], []>} : vector<8x128xf32>, vector<128x128xf32>, vector<8x128xf32> -> vector<8x128xf32>
    %c0_5 = arith.constant 0 : index
    %c0_6 = arith.constant 0 : index
    %4 = vector.load %arg4[%c0_5, %c0_6] : memref<128x128xf32, #tpu.memory_space<vmem>>, vector<128x128xf32>
    %cst_7 = arith.constant dense<0.000000e+00> : vector<8x128xf32>
    %5 = tpu.matmul %0, %4, %cst_7 {dimension_numbers = #tpu.dot_dimension_numbers<[1], [0], [0], [1], [0, 0, 1, 1], [], []>} : vector<8x128xf32>, vector<128x128xf32>, vector<8x128xf32> -> vector<8x128xf32>
    %6 = arith.addf %3, %5 : vector<8x128xf32>
    %c0_8 = arith.constant 0 : index
    %c0_9 = arith.constant 0 : index
    %7 = vector.load %arg5[%c0_8, %c0_9] : memref<8x128xf32, #tpu.memory_space<vmem>>, vector<8x128xf32>
    %8 = vector.extract_strided_slice %7 {offsets = [0, 0], sizes = [1, 128], strides = [1, 1]} : vector<8x128xf32> to vector<1x128xf32>
    %9 = vector.extract_strided_slice %7 {offsets = [1, 0], sizes = [1, 128], strides = [1, 1]} : vector<8x128xf32> to vector<1x128xf32>
    %10 = vector.extract_strided_slice %7 {offsets = [2, 0], sizes = [1, 128], strides = [1, 1]} : vector<8x128xf32> to vector<1x128xf32>
    %11 = vector.broadcast %10 : vector<1x128xf32> to vector<8x128xf32>
    %12 = arith.mulf %11, %0 : vector<8x128xf32>
    %13 = vector.broadcast %8 : vector<1x128xf32> to vector<8x128xf32>
    %14 = arith.addf %6, %13 : vector<8x128xf32>
    %15 = math.tanh %14 : vector<8x128xf32>
    %16 = vector.broadcast %9 : vector<1x128xf32> to vector<8x128xf32>
    %17 = arith.mulf %16, %15 : vector<8x128xf32>
    %18 = arith.addf %12, %17 : vector<8x128xf32>
    %c0_10 = arith.constant 0 : index
    %c0_11 = arith.constant 0 : index
    %19 = vector.load %arg6[%c0_10, %c0_11] : memref<8x128xf32, #tpu.memory_space<vmem>>, vector<8x128xf32>
    tpu.vector_store %arg6[%c0_10, %c0_11], %18 {strides = array<i32>} : memref<8x128xf32, #tpu.memory_space<vmem>>, vector<8x128xf32>,
    return
  }
  func.func @transform_0(%arg0: i32) -> (i32, i32) {
    %c0_i32 = arith.constant 0 : i32
    %c0_i32_0 = arith.constant 0 : i32
    return %arg0, %c0_i32 : i32, i32
  }
  func.func @transform_1(%arg0: i32) -> (i32, i32) {
    %c0_i32 = arith.constant 0 : i32
    %c0_i32_0 = arith.constant 0 : i32
    return %arg0, %c0_i32 : i32, i32
  }
  func.func @transform_2(%arg0: i32) -> (i32, i32) {
    %c0_i32 = arith.constant 0 : i32
    %c0_i32_0 = arith.constant 0 : i32
    %c0_i32_1 = arith.constant 0 : i32
    return %c0_i32, %c0_i32_0 : i32, i32
  }
  func.func @transform_3(%arg0: i32) -> (i32, i32) {
    %c0_i32 = arith.constant 0 : i32
    %c0_i32_0 = arith.constant 0 : i32
    %c0_i32_1 = arith.constant 0 : i32
    return %c0_i32, %c0_i32_0 : i32, i32
  }
  func.func @transform_4(%arg0: i32) -> (i32, i32) {
    %c0_i32 = arith.constant 0 : i32
    %c0_i32_0 = arith.constant 0 : i32
    %c0_i32_1 = arith.constant 0 : i32
    return %c0_i32, %c0_i32_0 : i32, i32
  }
  func.func @transform_5(%arg0: i32) -> (i32, i32) {
    %c0_i32 = arith.constant 0 : i32
    %c0_i32_0 = arith.constant 0 : i32
    return %arg0, %c0_i32 : i32, i32
  }
}

</mosaic_0001>

<llo_original>
// kernel: tpu_custom_call.1
$region0: #{tpu_custom_call.1}
  #allocation0 [shape = 'u32[]', space=smem, size = 0x4, offset = 0x4, fixed_abs, tag = 'smem constant byte address 0x4 - core index']
  #allocation1 [shape = 'u32[144,128]{1,0:T(1,128)}', space=vmem, size = 0x12000, scoped, tag = 'internal scratch']
  %s0 = inlined_call_operand.hbm [shape: f32[8,128], index: 0, kind: input, shape index: {}]
  %s1 = inlined_call_operand.hbm [shape: f32[8,128], index: 1, kind: input, shape index: {}]
  %s2 = inlined_call_operand.hbm [shape: f32[128,128], index: 2, kind: input, shape index: {}]
  %s3 = inlined_call_operand.hbm [shape: f32[128,128], index: 3, kind: input, shape index: {}]
  %s4 = inlined_call_operand.vmem [shape: f32[8,128], index: 4, kind: input, shape index: {}]
  %s5 = inlined_call_operand.hbm [shape: f32[8,128], index: 5, kind: output, shape index: {}]
  %s6 = sld [smem:[#allocation0]]
  $region46: #{tpu_custom_call.1} parent=0
    _
  %s8 = ssub.s32 1, %s6
  %s9 = scalar_select 0, %s8, %s6
  $region1: #{tpu_custom_call.1} parent=0
    #allocation2 [shape = 'u8[4096]{0}', space=vmem, size = 0x1000, scoped, tag = 'input window, operand 0, single buffered']
    #allocation3 [shape = 's32[1]{0}', space=sflag, size = 0x4, scoped, tag = 'scoped memory for tpu_custom_call.1']
    #allocation4 [shape = 's32[1]{0}', space=sflag, size = 0x4, scoped, tag = 'scoped memory for tpu_custom_call.1']
    #allocation5 [shape = 'u8[4096]{0}', space=vmem, size = 0x1000, scoped, tag = 'input window, operand 1, single buffered']
    #allocation6 [shape = 's32[1]{0}', space=sflag, size = 0x4, scoped, tag = 'scoped memory for tpu_custom_call.1']
    #allocation7 [shape = 'u8[65536]{0}', space=vmem, size = 0x10000, scoped, tag = 'input window, operand 2, single buffered']
    #allocation8 [shape = 'u8[65536]{0}', space=vmem, size = 0x10000, scoped, tag = 'input window, operand 3, single buffered']
    #allocation9 [shape = 's32[1]{0}', space=sflag, size = 0x4, scoped, tag = 'scoped memory for tpu_custom_call.1']
    #allocation10 [shape = 'u8[4096]{0}', space=vmem, size = 0x1000, scoped, tag = 'output window, operand 0, single buffered']
    %10 = vsyncpa [#allocation3], 0
    %11 = vsyncpa [#allocation6], 0
    %12 = vsyncpa [#allocation9], 0
    %13 = vsyncpa [#allocation4], 0
    // Predicated region
    $region2: #{tpu_custom_call.1} parent=1 // pred_check
      _
    $region3: #{tpu_custom_call.1} parent=1 // pred_check_branch
      %15 = sbr.rel (0) target = $region5
    $region4: #{tpu_custom_call.1} parent=1 // pred_region
      %s17 = ssub.s32 128, 128
      %18 = vsyncadd [#allocation3], %s17
      %s20 = sshll.u32 [#allocation2], 4
      %s21 = int_to_ptr.vmem [resolvable:$true] %s20
      %23 = dma.hbm_to_vmem [thread:$0]  %s0, 128, %s21, [#allocation3]
    $region5: #{tpu_custom_call.1} parent=1 // pred_fallthru
      _
    // Predicated region
    $region6: #{tpu_custom_call.1} parent=1 // pred_check
      _
    $region7: #{tpu_custom_call.1} parent=1 // pred_check_branch
      %25 = sbr.rel (0) target = $region9
    $region8: #{tpu_custom_call.1} parent=1 // pred_region
      %s27 = ssub.s32 128, 128
      %28 = vsyncadd [#allocation6], %s27
      %s30 = sshll.u32 [#allocation5], 4
      %s31 = int_to_ptr.vmem [resolvable:$true] %s30
      %33 = dma.hbm_to_vmem [thread:$0]  %s1, 128, %s31, [#allocation6]
    $region9: #{tpu_custom_call.1} parent=1 // pred_fallthru
      _
    // Predicated region
    $region10: #{tpu_custom_call.1} parent=1 // pred_check
      _
    $region11: #{tpu_custom_call.1} parent=1 // pred_check_branch
      %35 = sbr.rel (0) target = $region13
    $region12: #{tpu_custom_call.1} parent=1 // pred_region
      %s37 = ssub.s32 2048, 2048
      %38 = vsyncadd [#allocation6], %s37
      %s39 = sshll.u32 [#allocation7], 4
      %s40 = int_to_ptr.vmem [resolvable:$true] %s39
      %45 = dma.hbm_to_vmem [thread:$0]  %s2, 2048, %s40, [#allocation6], 128, 128, 8
    $region13: #{tpu_custom_call.1} parent=1 // pred_fallthru
      _
    // Predicated region
    $region14: #{tpu_custom_call.1} parent=1 // pred_check
      _
    $region15: #{tpu_custom_call.1} parent=1 // pred_check_branch
      %47 = sbr.rel (0) target = $region17
    $region16: #{tpu_custom_call.1} parent=1 // pred_region
      %s49 = ssub.s32 2048, 2048
      %50 = vsyncadd [#allocation9], %s49
      %s51 = sshll.u32 [#allocation8], 4
      %s52 = int_to_ptr.vmem [resolvable:$true] %s51
      %57 = dma.hbm_to_vmem [thread:$0]  %s3, 2048, %s52, [#allocation9], 128, 128, 8
    $region17: #{tpu_custom_call.1} parent=1 // pred_fallthru
      _
    // Predicated region
    $region18: #{tpu_custom_call.1} parent=1 // pred_check
      _
    $region19: #{tpu_custom_call.1} parent=1 // pred_check_branch
      %59 = sbr.rel (0) target = $region21
    $region20: #{tpu_custom_call.1} parent=1 // pred_region
      _
    $region21: #{tpu_custom_call.1} parent=1 // pred_fallthru
      _
    // Predicated region
    $region22: #{tpu_custom_call.1} parent=1 // pred_check
      _
    $region23: #{tpu_custom_call.1} parent=1 // pred_check_branch
      %61 = sbr.rel (0) target = $region25
    $region24: #{tpu_custom_call.1} parent=1 // pred_region
      %62 = dma.done [#allocation3], 128
    $region25: #{tpu_custom_call.1} parent=1 // pred_fallthru
      _
    // Predicated region
    $region26: #{tpu_custom_call.1} parent=1 // pred_check
      _
    $region27: #{tpu_custom_call.1} parent=1 // pred_check_branch
      %64 = sbr.rel (0) target = $region29
    $region28: #{tpu_custom_call.1} parent=1 // pred_region
      %65 = dma.done [#allocation6], 128
    $region29: #{tpu_custom_call.1} parent=1 // pred_fallthru
      _
    // Predicated region
    $region30: #{tpu_custom_call.1} parent=1 // pred_check
      _
    $region31: #{tpu_custom_call.1} parent=1 // pred_check_branch
      %67 = sbr.rel (0) target = $region33
    $region32: #{tpu_custom_call.1} parent=1 // pred_region
      %68 = dma.done [#allocation6], 2048
    $region33: #{tpu_custom_call.1} parent=1 // pred_fallthru
      _
    // Predicated region
    $region34: #{tpu_custom_call.1} parent=1 // pred_check
      _
    $region35: #{tpu_custom_call.1} parent=1 // pred_check_branch
      %70 = sbr.rel (0) target = $region37
    $region36: #{tpu_custom_call.1} parent=1 // pred_region
      %71 = dma.done [#allocation9], 2048
    $region37: #{tpu_custom_call.1} parent=1 // pred_fallthru
      _
    %v72 = vld [vmem:[#allocation5] sm:$0xff]
    %v73 = vld [vmem:[#allocation2] sm:$0xff]
    %v74 = vld [vmem:[#allocation7] sm:$0xff]
    %v75 = vld [vmem:[#allocation7 + $0x8] sm:$0xff]
    %v76 = vld [vmem:[#allocation7 + $0x10] sm:$0xff]
    %v77 = vld [vmem:[#allocation7 + $0x18] sm:$0xff]
    %v78 = vld [vmem:[#allocation7 + $0x20] sm:$0xff]
    %v79 = vld [vmem:[#allocation7 + $0x28] sm:$0xff]
    %v80 = vld [vmem:[#allocation7 + $0x30] sm:$0xff]
    %v81 = vld [vmem:[#allocation7 + $0x38] sm:$0xff]
    %v82 = vld [vmem:[#allocation7 + $0x40] sm:$0xff]
    %v83 = vld [vmem:[#allocation7 + $0x48] sm:$0xff]
    %v84 = vld [vmem:[#allocation7 + $0x50] sm:$0xff]
    %v85 = vld [vmem:[#allocation7 + $0x58] sm:$0xff]
    %v86 = vld [vmem:[#allocation7 + $0x60] sm:$0xff]
    %v87 = vld [vmem:[#allocation7 + $0x68] sm:$0xff]
    %v88 = vld [vmem:[#allocation7 + $0x70] sm:$0xff]
    %v89 = vld [vmem:[#allocation7 + $0x78] sm:$0xff]
    %v90 = vld [vmem:[#allocation8] sm:$0xff]
    %v91 = vld [vmem:[#allocation8 + $0x8] sm:$0xff]
    %v92 = vld [vmem:[#allocation8 + $0x10] sm:$0xff]
    %v93 = vld [vmem:[#allocation8 + $0x18] sm:$0xff]
    %v94 = vld [vmem:[#allocation8 + $0x20] sm:$0xff]
    %v95 = vld [vmem:[#allocation8 + $0x28] sm:$0xff]
    %v96 = vld [vmem:[#allocation8 + $0x30] sm:$0xff]
    %v97 = vld [vmem:[#allocation8 + $0x38] sm:$0xff]
    %v98 = vld [vmem:[#allocation8 + $0x40] sm:$0xff]
    %v99 = vld [vmem:[#allocation8 + $0x48] sm:$0xff]
    %v100 = vld [vmem:[#allocation8 + $0x50] sm:$0xff]
    %v101 = vld [vmem:[#allocation8 + $0x58] sm:$0xff]
    %v102 = vld [vmem:[#allocation8 + $0x60] sm:$0xff]
    %v103 = vld [vmem:[#allocation8 + $0x68] sm:$0xff]
    %v104 = vld [vmem:[#allocation8 + $0x70] sm:$0xff]
    %v105 = vld [vmem:[#allocation8 + $0x78] sm:$0xff]
    %106 = vmatprep.subr.mxu0 0.0
    %107 = vmatpush1.msra.mxu0 %v90
    %108 = vmatprep.subr.mxu0 0.0
    %109 = vmatpush1.msra.mxu0 %v91
    %110 = vmatprep.subr.mxu0 0.0
    %111 = vmatpush1.msra.mxu0 %v92
    %112 = vmatprep.subr.mxu0 0.0
    %113 = vmatpush1.msra.mxu0 %v93
    %114 = vmatprep.subr.mxu0 0.0
    %115 = vmatpush1.msra.mxu0 %v94
    %116 = vmatprep.subr.mxu0 0.0
    %117 = vmatpush1.msra.mxu0 %v95
    %118 = vmatprep.subr.mxu0 0.0
    %119 = vmatpush1.msra.mxu0 %v96
    %120 = vmatprep.subr.mxu0 0.0
    %121 = vmatpush1.msra.mxu0 %v97
    %122 = vmatprep.subr.mxu0 0.0
    %123 = vmatpush1.msra.mxu0 %v98
    %124 = vmatprep.subr.mxu0 0.0
    %125 = vmatpush1.msra.mxu0 %v99
    %126 = vmatprep.subr.mxu0 0.0
    %127 = vmatpush1.msra.mxu0 %v100
    %128 = vmatprep.subr.mxu0 0.0
    %129 = vmatpush1.msra.mxu0 %v101
    %130 = vmatprep.subr.mxu0 0.0
    %131 = vmatpush1.msra.mxu0 %v102
    %132 = vmatprep.subr.mxu0 0.0
    %133 = vmatpush1.msra.mxu0 %v103
    %134 = vmatprep.subr.mxu0 0.0
    %135 = vmatpush1.msra.mxu0 %v104
    %136 = vmatprep.subr.mxu0 0.0
    %137 = vmatpush1.msra.mxu0 %v105
    %138 = vmatprep.subr.mxu0 0.0
    %139 = vmatpush1.msra.mxu0 0.0
    %140 = vmatprep.subr.mxu0 0.0
    %141 = vmatpush1.msra.mxu0 0.0
    %142 = vmatprep.subr.mxu0 0.0
    %143 = vmatpush1.msra.mxu0 0.0
    %144 = vmatprep.subr.mxu0 0.0
    %145 = vmatpush1.msra.mxu0 0.0
    %146 = vmatprep.subr.mxu0 0.0
    %147 = vmatpush1.msra.mxu0 0.0
    %148 = vmatprep.subr.mxu0 0.0
    %149 = vmatpush1.msra.mxu0 0.0
    %150 = vmatprep.subr.mxu0 0.0
    %151 = vmatpush1.msra.mxu0 0.0
    %152 = vmatprep.subr.mxu0 0.0
    %153 = vmatpush1.msra.mxu0 0.0
    %154 = vmatprep.subr.mxu0 0.0
    %155 = vmatpush1.msra.mxu0 0.0
    %156 = vmatprep.subr.mxu0 0.0
    %157 = vmatpush1.msra.mxu0 0.0
    %158 = vmatprep.subr.mxu0 0.0
    %159 = vmatpush1.msra.mxu0 0.0
    %160 = vmatprep.subr.mxu0 0.0
    %161 = vmatpush1.msra.mxu0 0.0
    %162 = vmatprep.subr.mxu0 0.0
    %163 = vmatpush1.msra.mxu0 0.0
    %164 = vmatprep.subr.mxu0 0.0
    %165 = vmatpush1.msra.mxu0 0.0
    %166 = vmatprep.subr.mxu0 0.0
    %167 = vmatpush1.msra.mxu0 0.0
    %168 = vmatprep.subr.mxu0 0.0
    %169 = vmatpush1.msra.mxu0 0.0
    %170 = vmatprep.mubr.f32.mxu0 0.0
    %171 = vmatmul.mubr.f32.gmra.mrb[0].mxu0 %v72
    %v172 = vpop.f32.mrb[0].mxu0
    %v173 = vadd.f32 0.0, %v172
    %v174 = vpop.f32.mrb[0].mxu0
    %175 = vdwg.mxu0
    %176 = vmatprep.subr.mxu0 0.0
    %177 = vmatpush1.msra.mxu0 %v74
    %178 = vmatprep.subr.mxu0 0.0
    %179 = vmatpush1.msra.mxu0 %v75
    %180 = vmatprep.subr.mxu0 0.0
    %181 = vmatpush1.msra.mxu0 %v76
    %182 = vmatprep.subr.mxu0 0.0
    %183 = vmatpush1.msra.mxu0 %v77
    %184 = vmatprep.subr.mxu0 0.0
    %185 = vmatpush1.msra.mxu0 %v78
    %186 = vmatprep.subr.mxu0 0.0
    %187 = vmatpush1.msra.mxu0 %v79
    %188 = vmatprep.subr.mxu0 0.0
    %189 = vmatpush1.msra.mxu0 %v80
    %190 = vmatprep.subr.mxu0 0.0
    %191 = vmatpush1.msra.mxu0 %v81
    %192 = vmatprep.subr.mxu0 0.0
    %193 = vmatpush1.msra.mxu0 %v82
    %194 = vmatprep.subr.mxu0 0.0
    %195 = vmatpush1.msra.mxu0 %v83
    %196 = vmatprep.subr.mxu0 0.0
    %197 = vmatpush1.msra.mxu0 %v84
    %198 = vmatprep.subr.mxu0 0.0
    %199 = vmatpush1.msra.mxu0 %v85
    %200 = vmatprep.subr.mxu0 0.0
    %201 = vmatpush1.msra.mxu0 %v86
    %202 = vmatprep.subr.mxu0 0.0
    %203 = vmatpush1.msra.mxu0 %v87
    %204 = vmatprep.subr.mxu0 0.0
    %205 = vmatpush1.msra.mxu0 %v88
    %206 = vmatprep.subr.mxu0 0.0
    %207 = vmatpush1.msra.mxu0 %v89
    %208 = vmatprep.subr.mxu0 0.0
    %209 = vmatpush1.msra.mxu0 0.0
    %210 = vmatprep.subr.mxu0 0.0
    %211 = vmatpush1.msra.mxu0 0.0
    %212 = vmatprep.subr.mxu0 0.0
    %213 = vmatpush1.msra.mxu0 0.0
    %214 = vmatprep.subr.mxu0 0.0
    %215 = vmatpush1.msra.mxu0 0.0
    %216 = vmatprep.subr.mxu0 0.0
    %217 = vmatpush1.msra.mxu0 0.0
    %218 = vmatprep.subr.mxu0 0.0
    %219 = vmatpush1.msra.mxu0 0.0
    %220 = vmatprep.subr.mxu0 0.0
    %221 = vmatpush1.msra.mxu0 0.0
    %222 = vmatprep.subr.mxu0 0.0
    %223 = vmatpush1.msra.mxu0 0.0
    %224 = vmatprep.subr.mxu0 0.0
    %225 = vmatpush1.msra.mxu0 0.0
    %226 = vmatprep.subr.mxu0 0.0
    %227 = vmatpush1.msra.mxu0 0.0
    %228 = vmatprep.subr.mxu0 0.0
    %229 = vmatpush1.msra.mxu0 0.0
    %230 = vmatprep.subr.mxu0 0.0
    %231 = vmatpush1.msra.mxu0 0.0
    %232 = vmatprep.subr.mxu0 0.0
    %233 = vmatpush1.msra.mxu0 0.0
    %234 = vmatprep.subr.mxu0 0.0
    %235 = vmatpush1.msra.mxu0 0.0
    %236 = vmatprep.subr.mxu0 0.0
    %237 = vmatpush1.msra.mxu0 0.0
    %238 = vmatprep.subr.mxu0 0.0
    %239 = vmatpush1.msra.mxu0 0.0
    %240 = vmatprep.mubr.f32.mxu0 0.0
    %241 = vmatmul.mubr.f32.gmra.mrb[0].mxu0 %v73
    %v242 = vpop.f32.mrb[0].mxu0
    %v243 = vadd.f32 %v173, %v242
    %v244 = vpop.f32.mrb[0].mxu0
    %245 = vdwg.mxu0
    %v246 = vld [vmem:[%s4] sm:$0xff]
    %v247 = vlaneseq
    %v248 = vshrl.u32 %v247, 7
    %v249 = vsub.s32 2, %v248
    %v250 = vrot.slane %v246, %v249
    %v251 = vmul.f32 %v250, %v72
    %v252 = vlaneseq
    %v253 = vshrl.u32 %v252, 7
    %v254 = vsub.s32 0, %v253
    %v255 = vrot.slane %v246, %v254
    %v256 = vadd.f32 %v243, %v255
    %v257 = vtanh.pop %v256
    %v258 = vlaneseq
    %v259 = vshrl.u32 %v258, 7
    %v260 = vsub.s32 1, %v259
    %v261 = vrot.slane %v246, %v260
    %v262 = vmul.f32 %v261, %v257
    %v263 = vadd.f32 %v251, %v262
    %264 = vst [vmem:[#allocation10] sm:$0xff] %v263
    // Predicated region
    $region38: #{tpu_custom_call.1} parent=1 // pred_check
      _
    $region39: #{tpu_custom_call.1} parent=1 // pred_check_branch
      %266 = sbr.rel (0) target = $region41
    $region40: #{tpu_custom_call.1} parent=1 // pred_region
      %s268 = ssub.s32 128, 128
      %269 = vsyncadd [#allocation4], %s268
      %s271 = sshll.u32 [#allocation10], 4
      %s272 = int_to_ptr.vmem [resolvable:$true] %s271
      %274 = dma.vmem_to_hbm [thread:$0]  %s272, 128, %s5, [#allocation4]
    $region41: #{tpu_custom_call.1} parent=1 // pred_fallthru
      _
    // Predicated region
    $region42: #{tpu_custom_call.1} parent=1 // pred_check
      _
    $region43: #{tpu_custom_call.1} parent=1 // pred_check_branch
      %276 = sbr.rel (0) target = $region45
    $region44: #{tpu_custom_call.1} parent=1 // pred_region
      %277 = dma.done [#allocation4], 128
    $region45: #{tpu_custom_call.1} parent=1 // pred_fallthru
      _
    %278 = vsyncpa [#allocation3], 1
    %279 = vsyncpa [#allocation6], 1
    %280 = vsyncpa [#allocation9], 1
    %281 = vsyncpa [#allocation4], 1

// kernel: tpu_custom_call.1
$region0: #{tpu_custom_call.1}
  #allocation0 [shape = 'u32[]', space=smem, size = 0x4, offset = 0x4, fixed_abs, tag = 'smem constant byte address 0x4 - core index']
  #allocation1 [shape = 'u32[144,128]{1,0:T(1,128)}', space=vmem, size = 0x12000, scoped, tag = 'internal scratch']
  %s0 = inlined_call_operand.hbm [shape: f32[8,128], index: 0, kind: input, shape index: {}]
  %s1 = inlined_call_operand.hbm [shape: f32[8,128], index: 1, kind: input, shape index: {}]
  %s2 = inlined_call_operand.hbm [shape: f32[128,128], index: 2, kind: input, shape index: {}]
  %s3 = inlined_call_operand.hbm [shape: f32[128,128], index: 3, kind: input, shape index: {}]
  %s4 = inlined_call_operand.vmem [shape: f32[8,128], index: 4, kind: input, shape index: {}]
  %s5 = inlined_call_operand.hbm [shape: f32[8,128], index: 5, kind: output, shape index: {}]
  %s6 = sld [smem:[#allocation0]]
  $region46: #{tpu_custom_call.1} parent=0
    _
  %s8 = ssub.s32 1, %s6
  %s9 = scalar_select 0, %s8, %s6
  $region1: #{tpu_custom_call.1} parent=0
    #allocation2 [shape = 'u8[4096]{0}', space=vmem, size = 0x1000, scoped, tag = 'input window, operand 0, single buffered']
    #allocation3 [shape = 's32[1]{0}', space=sflag, size = 0x4, scoped, tag = 'scoped memory for tpu_custom_call.1']
    #allocation4 [shape = 's32[1]{0}', space=sflag, size = 0x4, scoped, tag = 'scoped memory for tpu_custom_call.1']
    #allocation5 [shape = 'u8[4096]{0}', space=vmem, size = 0x1000, scoped, tag = 'input window, operand 1, single buffered']
    #allocation6 [shape = 's32[1]{0}', space=sflag, size = 0x4, scoped, tag = 'scoped memory for tpu_custom_call.1']
    #allocation7 [shape = 'u8[65536]{0}', space=vmem, size = 0x10000, scoped, tag = 'input window, operand 2, single buffered']
    #allocation8 [shape = 'u8[65536]{0}', space=vmem, size = 0x10000, scoped, tag = 'input window, operand 3, single buffered']
    #allocation9 [shape = 's32[1]{0}', space=sflag, size = 0x4, scoped, tag = 'scoped memory for tpu_custom_call.1']
    #allocation10 [shape = 'u8[4096]{0}', space=vmem, size = 0x1000, scoped, tag = 'output window, operand 0, single buffered']
    %10 = vsyncpa [#allocation3], 0
    %11 = vsyncpa [#allocation6], 0
    %12 = vsyncpa [#allocation9], 0
    %13 = vsyncpa [#allocation4], 0
    // Predicated region
    $region2: #{tpu_custom_call.1} parent=1 // pred_check
      _
    $region3: #{tpu_custom_call.1} parent=1 // pred_check_branch
      %15 = sbr.rel (0) target = $region5
    $region4: #{tpu_custom_call.1} parent=1 // pred_region
      %s17 = ssub.s32 128, 128
      %18 = vsyncadd [#allocation3], %s17
      %s20 = sshll.u32 [#allocation2], 4
      %s21 = int_to_ptr.vmem [resolvable:$true] %s20
      %23 = dma.hbm_to_vmem [thread:$0]  %s0, 128, %s21, [#allocation3]
    $region5: #{tpu_custom_call.1} parent=1 // pred_fallthru
      _
    // Predicated region
    $region6: #{tpu_custom_call.1} parent=1 // pred_check
      _
    $region7: #{tpu_custom_call.1} parent=1 // pred_check_branch
      %25 = sbr.rel (0) target = $region9
    $region8: #{tpu_custom_call.1} parent=1 // pred_region
      %s27 = ssub.s32 128, 128
      %28 = vsyncadd [#allocation6], %s27
      %s30 = sshll.u32 [#allocation5], 4
      %s31 = int_to_ptr.vmem [resolvable:$true] %s30
      %33 = dma.hbm_to_vmem [thread:$0]  %s1, 128, %s31, [#allocation6]
    $region9: #{tpu_custom_call.1} parent=1 // pred_fallthru
      _
    // Predicated region
    $region10: #{tpu_custom_call.1} parent=1 // pred_check
      _
    $region11: #{tpu_custom_call.1} parent=1 // pred_check_branch
      %35 = sbr.rel (0) target = $region13
    $region12: #{tpu_custom_call.1} parent=1 // pred_region
      %s37 = ssub.s32 2048, 2048
      %38 = vsyncadd [#allocation6], %s37
      %s39 = sshll.u32 [#allocation7], 4
      %s40 = int_to_ptr.vmem [resolvable:$true] %s39
      %45 = dma.hbm_to_vmem [thread:$0]  %s2, 2048, %s40, [#allocation6], 128, 128, 8
    $region13: #{tpu_custom_call.1} parent=1 // pred_fallthru
      _
    // Predicated region
    $region14: #{tpu_custom_call.1} parent=1 // pred_check
      _
    $region15: #{tpu_custom_call.1} parent=1 // pred_check_branch
      %47 = sbr.rel (0) target = $region17
    $region16: #{tpu_custom_call.1} parent=1 // pred_region
      %s49 = ssub.s32 2048, 2048
      %50 = vsyncadd [#allocation9], %s49
      %s51 = sshll.u32 [#allocation8], 4
      %s52 = int_to_ptr.vmem [resolvable:$true] %s51
      %57 = dma.hbm_to_vmem [thread:$0]  %s3, 2048, %s52, [#allocation9], 128, 128, 8
    $region17: #{tpu_custom_call.1} parent=1 // pred_fallthru
      _
    // Predicated region
    $region18: #{tpu_custom_call.1} parent=1 // pred_check
      _
    $region19: #{tpu_custom_call.1} parent=1 // pred_check_branch
      %59 = sbr.rel (0) target = $region21
    $region20: #{tpu_custom_call.1} parent=1 // pred_region
      _
    $region21: #{tpu_custom_call.1} parent=1 // pred_fallthru
      _
    // Predicated region
    $region22: #{tpu_custom_call.1} parent=1 // pred_check
      _
    $region23: #{tpu_custom_call.1} parent=1 // pred_check_branch
      %61 = sbr.rel (0) target = $region25
    $region24: #{tpu_custom_call.1} parent=1 // pred_region
      %62 = dma.done [#allocation3], 128
    $region25: #{tpu_custom_call.1} parent=1 // pred_fallthru
      _
    // Predicated region
    $region26: #{tpu_custom_call.1} parent=1 // pred_check
      _
    $region27: #{tpu_custom_call.1} parent=1 // pred_check_branch
      %64 = sbr.rel (0) target = $region29
    $region28: #{tpu_custom_call.1} parent=1 // pred_region
      %65 = dma.done [#allocation6], 128
    $region29: #{tpu_custom_call.1} parent=1 // pred_fallthru
      _
    // Predicated region
    $region30: #{tpu_custom_call.1} parent=1 // pred_check
      _
    $region31: #{tpu_custom_call.1} parent=1 // pred_check_branch
      %67 = sbr.rel (0) target = $region33
    $region32: #{tpu_custom_call.1} parent=1 // pred_region
      %68 = dma.done [#allocation6], 2048
    $region33: #{tpu_custom_call.1} parent=1 // pred_fallthru
      _
    // Predicated region
    $region34: #{tpu_custom_call.1} parent=1 // pred_check
      _
    $region35: #{tpu_custom_call.1} parent=1 // pred_check_branch
      %70 = sbr.rel (0) target = $region37
    $region36: #{tpu_custom_call.1} parent=1 // pred_region
      %71 = dma.done [#allocation9], 2048
    $region37: #{tpu_custom_call.1} parent=1 // pred_fallthru
      _
    %v72 = vld [vmem:[#allocation5] sm:$0xff]
    %v73 = vld [vmem:[#allocation2] sm:$0xff]
    %v74 = vld [vmem:[#allocation7] sm:$0xff]
    %v75 = vld [vmem:[#allocation7 + $0x8] sm:$0xff]
    %v76 = vld [vmem:[#allocation7 + $0x10] sm:$0xff]
    %v77 = vld [vmem:[#allocation7 + $0x18] sm:$0xff]
    %v78 = vld [vmem:[#allocation7 + $0x20] sm:$0xff]
    %v79 = vld [vmem:[#allocation7 + $0x28] sm:$0xff]
    %v80 = vld [vmem:[#allocation7 + $0x30] sm:$0xff]
    %v81 = vld [vmem:[#allocation7 + $0x38] sm:$0xff]
    %v82 = vld [vmem:[#allocation7 + $0x40] sm:$0xff]
    %v83 = vld [vmem:[#allocation7 + $0x48] sm:$0xff]
    %v84 = vld [vmem:[#allocation7 + $0x50] sm:$0xff]
    %v85 = vld [vmem:[#allocation7 + $0x58] sm:$0xff]
    %v86 = vld [vmem:[#allocation7 + $0x60] sm:$0xff]
    %v87 = vld [vmem:[#allocation7 + $0x68] sm:$0xff]
    %v88 = vld [vmem:[#allocation7 + $0x70] sm:$0xff]
    %v89 = vld [vmem:[#allocation7 + $0x78] sm:$0xff]
    %v90 = vld [vmem:[#allocation8] sm:$0xff]
    %v91 = vld [vmem:[#allocation8 + $0x8] sm:$0xff]
    %v92 = vld [vmem:[#allocation8 + $0x10] sm:$0xff]
    %v93 = vld [vmem:[#allocation8 + $0x18] sm:$0xff]
    %v94 = vld [vmem:[#allocation8 + $0x20] sm:$0xff]
    %v95 = vld [vmem:[#allocation8 + $0x28] sm:$0xff]
    %v96 = vld [vmem:[#allocation8 + $0x30] sm:$0xff]
    %v97 = vld [vmem:[#allocation8 + $0x38] sm:$0xff]
    %v98 = vld [vmem:[#allocation8 + $0x40] sm:$0xff]
    %v99 = vld [vmem:[#allocation8 + $0x48] sm:$0xff]
    %v100 = vld [vmem:[#allocation8 + $0x50] sm:$0xff]
    %v101 = vld [vmem:[#allocation8 + $0x58] sm:$0xff]
    %v102 = vld [vmem:[#allocation8 + $0x60] sm:$0xff]
    %v103 = vld [vmem:[#allocation8 + $0x68] sm:$0xff]
    %v104 = vld [vmem:[#allocation8 + $0x70] sm:$0xff]
    %v105 = vld [vmem:[#allocation8 + $0x78] sm:$0xff]
    %106 = vmatprep.subr.mxu0 0.0
    %107 = vmatpush1.msra.mxu0 %v90
    %108 = vmatprep.subr.mxu0 0.0
    %109 = vmatpush1.msra.mxu0 %v91
    %110 = vmatprep.subr.mxu0 0.0
    %111 = vmatpush1.msra.mxu0 %v92
    %112 = vmatprep.subr.mxu0 0.0
    %113 = vmatpush1.msra.mxu0 %v93
    %114 = vmatprep.subr.mxu0 0.0
    %115 = vmatpush1.msra.mxu0 %v94
    %116 = vmatprep.subr.mxu0 0.0
    %117 = vmatpush1.msra.mxu0 %v95
    %118 = vmatprep.subr.mxu0 0.0
    %119 = vmatpush1.msra.mxu0 %v96
    %120 = vmatprep.subr.mxu0 0.0
    %121 = vmatpush1.msra.mxu0 %v97
    %122 = vmatprep.subr.mxu0 0.0
    %123 = vmatpush1.msra.mxu0 %v98
    %124 = vmatprep.subr.mxu0 0.0
    %125 = vmatpush1.msra.mxu0 %v99
    %126 = vmatprep.subr.mxu0 0.0
    %127 = vmatpush1.msra.mxu0 %v100
    %128 = vmatprep.subr.mxu0 0.0
    %129 = vmatpush1.msra.mxu0 %v101
    %130 = vmatprep.subr.mxu0 0.0
    %131 = vmatpush1.msra.mxu0 %v102
    %132 = vmatprep.subr.mxu0 0.0
    %133 = vmatpush1.msra.mxu0 %v103
    %134 = vmatprep.subr.mxu0 0.0
    %135 = vmatpush1.msra.mxu0 %v104
    %136 = vmatprep.subr.mxu0 0.0
    %137 = vmatpush1.msra.mxu0 %v105
    %138 = vmatprep.subr.mxu0 0.0
    %139 = vmatpush1.msra.mxu0 0.0
    %140 = vmatprep.subr.mxu0 0.0
    %141 = vmatpush1.msra.mxu0 0.0
    %142 = vmatprep.subr.mxu0 0.0
    %143 = vmatpush1.msra.mxu0 0.0
    %144 = vmatprep.subr.mxu0 0.0
    %145 = vmatpush1.msra.mxu0 0.0
    %146 = vmatprep.subr.mxu0 0.0
    %147 = vmatpush1.msra.mxu0 0.0
    %148 = vmatprep.subr.mxu0 0.0
    %149 = vmatpush1.msra.mxu0 0.0
    %150 = vmatprep.subr.mxu0 0.0
    %151 = vmatpush1.msra.mxu0 0.0
    %152 = vmatprep.subr.mxu0 0.0
    %153 = vmatpush1.msra.mxu0 0.0
    %154 = vmatprep.subr.mxu0 0.0
    %155 = vmatpush1.msra.mxu0 0.0
    %156 = vmatprep.subr.mxu0 0.0
    %157 = vmatpush1.msra.mxu0 0.0
    %158 = vmatprep.subr.mxu0 0.0
    %159 = vmatpush1.msra.mxu0 0.0
    %160 = vmatprep.subr.mxu0 0.0
    %161 = vmatpush1.msra.mxu0 0.0
    %162 = vmatprep.subr.mxu0 0.0
    %163 = vmatpush1.msra.mxu0 0.0
    %164 = vmatprep.subr.mxu0 0.0
    %165 = vmatpush1.msra.mxu0 0.0
    %166 = vmatprep.subr.mxu0 0.0
    %167 = vmatpush1.msra.mxu0 0.0
    %168 = vmatprep.subr.mxu0 0.0
    %169 = vmatpush1.msra.mxu0 0.0
    %170 = vmatprep.mubr.f32.mxu0 0.0
    %171 = vmatmul.mubr.f32.gmra.mrb[0].mxu0 %v72
    %v172 = vpop.f32.mrb[0].mxu0
    %v173 = vadd.f32 0.0, %v172
    %v174 = vpop.f32.mrb[0].mxu0
    %175 = vdwg.mxu0
    %176 = vmatprep.subr.mxu0 0.0
    %177 = vmatpush1.msra.mxu0 %v74
    %178 = vmatprep.subr.mxu0 0.0
    %179 = vmatpush1.msra.mxu0 %v75
    %180 = vmatprep.subr.mxu0 0.0
    %181 = vmatpush1.msra.mxu0 %v76
    %182 = vmatprep.subr.mxu0 0.0
    %183 = vmatpush1.msra.mxu0 %v77
    %184 = vmatprep.subr.mxu0 0.0
    %185 = vmatpush1.msra.mxu0 %v78
    %186 = vmatprep.subr.mxu0 0.0
    %187 = vmatpush1.msra.mxu0 %v79
    %188 = vmatprep.subr.mxu0 0.0
    %189 = vmatpush1.msra.mxu0 %v80
    %190 = vmatprep.subr.mxu0 0.0
    %191 = vmatpush1.msra.mxu0 %v81
    %192 = vmatprep.subr.mxu0 0.0
    %193 = vmatpush1.msra.mxu0 %v82
    %194 = vmatprep.subr.mxu0 0.0
    %195 = vmatpush1.msra.mxu0 %v83
    %196 = vmatprep.subr.mxu0 0.0
    %197 = vmatpush1.msra.mxu0 %v84
    %198 = vmatprep.subr.mxu0 0.0
    %199 = vmatpush1.msra.mxu0 %v85
    %200 = vmatprep.subr.mxu0 0.0
    %201 = vmatpush1.msra.mxu0 %v86
    %202 = vmatprep.subr.mxu0 0.0
    %203 = vmatpush1.msra.mxu0 %v87
    %204 = vmatprep.subr.mxu0 0.0
    %205 = vmatpush1.msra.mxu0 %v88
    %206 = vmatprep.subr.mxu0 0.0
    %207 = vmatpush1.msra.mxu0 %v89
    %208 = vmatprep.subr.mxu0 0.0
    %209 = vmatpush1.msra.mxu0 0.0
    %210 = vmatprep.subr.mxu0 0.0
    %211 = vmatpush1.msra.mxu0 0.0
    %212 = vmatprep.subr.mxu0 0.0
    %213 = vmatpush1.msra.mxu0 0.0
    %214 = vmatprep.subr.mxu0 0.0
    %215 = vmatpush1.msra.mxu0 0.0
    %216 = vmatprep.subr.mxu0 0.0
    %217 = vmatpush1.msra.mxu0 0.0
    %218 = vmatprep.subr.mxu0 0.0
    %219 = vmatpush1.msra.mxu0 0.0
    %220 = vmatprep.subr.mxu0 0.0
    %221 = vmatpush1.msra.mxu0 0.0
    %222 = vmatprep.subr.mxu0 0.0
    %223 = vmatpush1.msra.mxu0 0.0
    %224 = vmatprep.subr.mxu0 0.0
    %225 = vmatpush1.msra.mxu0 0.0
    %226 = vmatprep.subr.mxu0 0.0
    %227 = vmatpush1.msra.mxu0 0.0
    %228 = vmatprep.subr.mxu0 0.0
    %229 = vmatpush1.msra.mxu0 0.0
    %230 = vmatprep.subr.mxu0 0.0
    %231 = vmatpush1.msra.mxu0 0.0
    %232 = vmatprep.subr.mxu0 0.0
    %233 = vmatpush1.msra.mxu0 0.0
    %234 = vmatprep.subr.mxu0 0.0
    %235 = vmatpush1.msra.mxu0 0.0
    %236 = vmatprep.subr.mxu0 0.0
    %237 = vmatpush1.msra.mxu0 0.0
    %238 = vmatprep.subr.mxu0 0.0
    %239 = vmatpush1.msra.mxu0 0.0
    %240 = vmatprep.mubr.f32.mxu0 0.0
    %241 = vmatmul.mubr.f32.gmra.mrb[0].mxu0 %v73
    %v242 = vpop.f32.mrb[0].mxu0
    %v243 = vadd.f32 %v173, %v242
    %v244 = vpop.f32.mrb[0].mxu0
    %245 = vdwg.mxu0
    %v246 = vld [vmem:[%s4] sm:$0xff]
    %v247 = vlaneseq
    %v248 = vshrl.u32 %v247, 7
    %v249 = vsub.s32 2, %v248
    %v250 = vrot.slane %v246, %v249
    %v251 = vmul.f32 %v250, %v72
    %v252 = vlaneseq
    %v253 = vshrl.u32 %v252, 7
    %v254 = vsub.s32 0, %v253
    %v255 = vrot.slane %v246, %v254
    %v256 = vadd.f32 %v243, %v255
    %v257 = vtanh.pop %v256
    %v258 = vlaneseq
    %v259 = vshrl.u32 %v258, 7
    %v260 = vsub.s32 1, %v259
    %v261 = vrot.slane %v246, %v260
    %v262 = vmul.f32 %v261, %v257
    %v263 = vadd.f32 %v251, %v262
    %264 = vst [vmem:[#allocation10] sm:$0xff] %v263
    // Predicated region
    $region38: #{tpu_custom_call.1} parent=1 // pred_check
      _
    $region39: #{tpu_custom_call.1} parent=1 // pred_check_branch
      %266 = sbr.rel (0) target = $region41
    $region40: #{tpu_custom_call.1} parent=1 // pred_region
      %s268 = ssub.s32 128, 128
      %269 = vsyncadd [#allocation4], %s268
      %s271 = sshll.u32 [#allocation10], 4
      %s272 = int_to_ptr.vmem [resolvable:$true] %s271
      %274 = dma.vmem_to_hbm [thread:$0]  %s272, 128, %s5, [#allocation4]
    $region41: #{tpu_custom_call.1} parent=1 // pred_fallthru
      _
    // Predicated region
    $region42: #{tpu_custom_call.1} parent=1 // pred_check
      _
    $region43: #{tpu_custom_call.1} parent=1 // pred_check_branch
      %276 = sbr.rel (0) target = $region45
    $region44: #{tpu_custom_call.1} parent=1 // pred_region
      %277 = dma.done [#allocation4], 128
    $region45: #{tpu_custom_call.1} parent=1 // pred_fallthru
      _
    %278 = vsyncpa [#allocation3], 1
    %279 = vsyncpa [#allocation6], 1
    %280 = vsyncpa [#allocation9], 1
    %281 = vsyncpa [#allocation4], 1

</llo_original>
